<compile_context>
chip_gen: v5e
topology: v5e:2x2
jax: 0.10.0
libtpu: 0.0.40
codegen_flags: <defaults>
</compile_context>

<pallas_src>
import functools

import jax
import jax.numpy as jnp
from jax.experimental import pallas as pl
from jax.experimental.pallas import tpu as pltpu


# Abramowitz & Stegun 4.4.46 coefficients (highest order first), |err| <= 2e-8.
_ACOS_COEFFS = (
    -0.0012624911, 0.0066700901, -0.0170881256, 0.0308918810,
    -0.0501743046, 0.0889789874, -0.2145988016, 1.5707963050,
)


def _acos_poly(x):
    """arccos(x) for x in [-1, 1], using only Mosaic-safe ops (mul/add/sqrt/abs/select)."""
    ax = jnp.abs(x)
    p = jnp.full_like(ax, _ACOS_COEFFS[0])
    for c in _ACOS_COEFFS[1:]:
        p = p * ax + c
    r = jnp.sqrt(jnp.maximum(1.0 - ax, 0.0)) * p          # arccos(|x|)
    return jnp.where(x < 0.0, jnp.float32(jnp.pi) - r, r)  # arccos(-x) = pi - arccos(x)


def _gen_re_sphere_kernel(real_ref, fake_ref, loss_ref, *, moment, inv_batch):
    """Fused sphere loss: projection (collapsed), arccos, moments, batch mean."""
    @pl.when(pl.program_id(0) == 0)
    def _init():
        loss_ref[...] = jnp.zeros_like(loss_ref)

    r = real_ref[...].astype(jnp.float32)            # (TB, D)
    f = fake_ref[...].astype(jnp.float32)            # (TB, D)

    # The only O(TB*D) work: three cross-lane row reductions.
    nr2 = jnp.sum(r * r, axis=-1, keepdims=True)     # ||real||^2   (TB, 1)
    nf2 = jnp.sum(f * f, axis=-1, keepdims=True)     # ||fake||^2   (TB, 1)
    rf = jnp.sum(r * f, axis=-1, keepdims=True)      # <real,fake>  (TB, 1)

    # Inverse stereographic projection, collapsed to per-row scalars.
    dr = nr2 + 1.0
    df = nf2 + 1.0
    ru2 = 4.0 * nr2 / (dr * dr)                      # ||r_u||^2
    fu2 = 4.0 * nf2 / (df * df)                      # ||f_u||^2
    r_v = (ru2 - 1.0) / (ru2 + 1.0)
    f_v = (fu2 - 1.0) / (fu2 + 1.0)

    # north_pole is the module's fixed one-hot at index D (the "v" coordinate),
    # so <fake_proj, north_pole> == f_v exactly.
    # TODO(synk): a general/trainable north_pole would need one extra (TB, D)
    # reduction: 2*<f, np[:, :D]>/(||f||^2+1) + f_v*np[:, D].
    dot_np = f_v
    dot_fr = 4.0 * rf / (dr * df) + f_v * r_v        # <fake_proj, real_proj>

    # Clamp: fp32 drift can push the sphere dot slightly outside [-1, 1].
    theta_np = _acos_poly(jnp.clip(dot_np, -1.0, 1.0))   # (TB, 1)
    theta_fr = _acos_poly(jnp.clip(dot_fr, -1.0, 1.0))   # (TB, 1)

    # sum_{i=1..moment} (theta_fr^i - theta_np^i), per row.
    pn = theta_np
    pf = theta_fr
    per_row = pf - pn
    for _ in range(2, moment + 1):
        pn = pn * theta_np
        pf = pf * theta_fr
        per_row = per_row + (pf - pn)

    # mean over the full batch == (1/B) * sum over all batch tiles.
    loss_ref[...] += inv_batch * jnp.sum(per_row, axis=0, keepdims=True)


def _pick_batch_tile(batch):
    # Keep the sublane (batch) tile a multiple of 8 (f32) and <= 512 rows:
    # 2 inputs x 2 pipeline buffers x 512 x 4 KiB = 8 MiB, inside even the
    # v5e 16 MiB scoped-VMEM default at D=1024 f32.
    for tb in (512, 256, 128, 64, 32, 16, 8):
        if batch % tb == 0:
            return tb
    return batch


def gen_re_sphere_loss(real, fake, north_pole, moment=3):
    """Pallas-backed equivalent of GenReSphere.forward(real, fake)."""
    B, D = real.shape
    assert fake.shape == (B, D)
    assert north_pole.shape == (B, D + 1)

    tb = _pick_batch_tile(B)
    grid = (B // tb,)

    loss = pl.pallas_call(
        functools.partial(_gen_re_sphere_kernel, moment=moment,
                          inv_batch=1.0 / B),
        grid=grid,
        in_specs=[
            pl.BlockSpec((tb, D), lambda t: (t, 0)),
            pl.BlockSpec((tb, D), lambda t: (t, 0)),
        ],
        out_specs=pl.BlockSpec((1, 1), lambda t: (0, 0)),
        out_shape=jax.ShapeDtypeStruct((1, 1), jnp.float32),
        compiler_params=pltpu.CompilerParams(
            # The scalar output is accumulated across batch tiles, so the grid
            # axis must be "arbitrary".
            # TODO(synk): for very large B on v7x, emit per-tile partials with
            # "parallel" semantics to shard the tiles across both TensorCores.
            dimension_semantics=("arbitrary",)),
    )(real, fake)
    return loss[0, 0]


# ----------------------- pure-JAX reference (for checking) -----------------------
def _inverse_stereographic_projection_ref(x):
    x_u = (2.0 * x).T / (jnp.linalg.norm(x, axis=1) ** 2 + 1.0)
    nu2 = jnp.linalg.norm(x_u, axis=0, keepdims=True) ** 2
    x_v = (nu2 - 1.0) / (nu2 + 1.0)
    return jnp.concatenate([x_u, x_v], axis=0).T


def _gen_re_sphere_ref(real, fake, north_pole, moment=3):
    rp = _inverse_stereographic_projection_ref(real)
    fp = _inverse_stereographic_projection_ref(fake)
    l1 = jnp.float32(0.0)
    l2 = jnp.float32(0.0)
    for i in range(1, moment + 1):
        l1 = l1 - jnp.mean(jnp.arccos(jnp.sum(fp * north_pole, -1)) ** i)
        l2 = l2 + jnp.mean(jnp.arccos(jnp.sum(fp * rp, -1)) ** i)
    return l1 + l2


if __name__ == "__main__":
    BATCH = 8
    DIMS = 1024          # hard-coded in GenReSphere.__init__
    MOMENT = 3

    # Deterministic "parameter": north pole one-hot of size DIMS+1 per batch row.
    north_pole = jax.nn.one_hot(
        jnp.full((BATCH,), DIMS, dtype=jnp.int32), DIMS + 1, dtype=jnp.float32)

    key = jax.random.PRNGKey(0)
    k_real, k_fake = jax.random.split(key)
    real = jax.random.normal(k_real, (BATCH, DIMS), dtype=jnp.float32)
    fake = jax.random.normal(k_fake, (BATCH, DIMS), dtype=jnp.float32)

    loss = gen_re_sphere_loss(real, fake, north_pole, moment=MOMENT)
    loss = jax.block_until_ready(loss)

    ref = jax.block_until_ready(_gen_re_sphere_ref(real, fake, north_pole, MOMENT))
    assert jnp.allclose(loss, ref, rtol=1e-3, atol=1e-3), (loss, ref)

    print("KERNEL_OK")
</pallas_src>

<mosaic_0001>
module attributes {stable_mosaic.version = 11 : i64} {
  func.func @_gen_re_sphere_kernel(%arg0: i32, %arg1: memref<8x1024xf32, #tpu.memory_space<vmem>>, %arg2: memref<8x1024xf32, #tpu.memory_space<vmem>>, %arg3: memref<1x1xf32, #tpu.memory_space<vmem>>) attributes {dimension_semantics = [#tpu.dimension_semantics<arbitrary>], iteration_bounds = array<i64: 1>, scalar_prefetch = 0 : i64, scratch_operands = 0 : i64, tpu.core_type = #tpu.core_type<tc>, window_params = [{transform_indices = @transform_0, window_bounds = array<i64: 8, 1024>}, {transform_indices = @transform_1, window_bounds = array<i64: 8, 1024>}, {pipeline_mode = #tpu.pipeline_mode<synchronous>, transform_indices = @transform_2, window_bounds = array<i64: 1, 1>}]} {
    %c0_i32 = arith.constant 0 : i32
    %0 = arith.cmpi eq, %arg0, %c0_i32 : i32
    %1 = arith.extui %0 : i1 to i32
    %c0_i32_0 = arith.constant 0 : i32
    %2 = arith.cmpi ne, %1, %c0_i32_0 : i32
    scf.if %2 {
      %cst_49 = arith.constant 0.000000e+00 : f32
      %134 = vector.broadcast %cst_49 : f32 to vector<1x1xf32>
      %c0_50 = arith.constant 0 : index
      %c0_51 = arith.constant 0 : index
      %135 = vector.load %arg3[%c0_50, %c0_51] : memref<1x1xf32, #tpu.memory_space<vmem>>, vector<1x1xf32>
      tpu.vector_store %arg3[%c0_50, %c0_51], %134 {strides = array<i32>} : memref<1x1xf32, #tpu.memory_space<vmem>>, vector<1x1xf32>,
    } else {
    }
    %c0 = arith.constant 0 : index
    %c0_1 = arith.constant 0 : index
    %3 = vector.load %arg1[%c0, %c0_1] : memref<8x1024xf32, #tpu.memory_space<vmem>>, vector<8x1024xf32>
    %c0_2 = arith.constant 0 : index
    %c0_3 = arith.constant 0 : index
    %4 = vector.load %arg2[%c0_2, %c0_3] : memref<8x1024xf32, #tpu.memory_space<vmem>>, vector<8x1024xf32>
    %5 = arith.mulf %3, %3 : vector<8x1024xf32>
    %cst = arith.constant dense<0.000000e+00> : vector<8xf32>
    %6 = vector.multi_reduction <add>, %5, %cst [1] : vector<8x1024xf32> to vector<8xf32>
    %7 = vector.shape_cast %6 : vector<8xf32> to vector<8x1xf32>
    %8 = arith.mulf %4, %4 : vector<8x1024xf32>
    %cst_4 = arith.constant dense<0.000000e+00> : vector<8xf32>
    %9 = vector.multi_reduction <add>, %8, %cst_4 [1] : vector<8x1024xf32> to vector<8xf32>
    %10 = vector.shape_cast %9 : vector<8xf32> to vector<8x1xf32>
    %11 = arith.mulf %3, %4 : vector<8x1024xf32>
    %cst_5 = arith.constant dense<0.000000e+00> : vector<8xf32>
    %12 = vector.multi_reduction <add>, %11, %cst_5 [1] : vector<8x1024xf32> to vector<8xf32>
    %13 = vector.shape_cast %12 : vector<8xf32> to vector<8x1xf32>
    %cst_6 = arith.constant 1.000000e+00 : f32
    %14 = vector.broadcast %cst_6 : f32 to vector<8x1xf32>
    %15 = arith.addf %7, %14 : vector<8x1xf32>
    %cst_7 = arith.constant 1.000000e+00 : f32
    %16 = vector.broadcast %cst_7 : f32 to vector<8x1xf32>
    %17 = arith.addf %10, %16 : vector<8x1xf32>
    %cst_8 = arith.constant 4.000000e+00 : f32
    %18 = vector.broadcast %cst_8 : f32 to vector<8x1xf32>
    %19 = arith.mulf %18, %7 : vector<8x1xf32>
    %20 = arith.mulf %15, %15 : vector<8x1xf32>
    %21 = arith.divf %19, %20 : vector<8x1xf32>
    %cst_9 = arith.constant 4.000000e+00 : f32
    %22 = vector.broadcast %cst_9 : f32 to vector<8x1xf32>
    %23 = arith.mulf %22, %10 : vector<8x1xf32>
    %24 = arith.mulf %17, %17 : vector<8x1xf32>
    %25 = arith.divf %23, %24 : vector<8x1xf32>
    %cst_10 = arith.constant 1.000000e+00 : f32
    %26 = vector.broadcast %cst_10 : f32 to vector<8x1xf32>
    %27 = arith.subf %21, %26 : vector<8x1xf32>
    %cst_11 = arith.constant 1.000000e+00 : f32
    %28 = vector.broadcast %cst_11 : f32 to vector<8x1xf32>
    %29 = arith.addf %21, %28 : vector<8x1xf32>
    %30 = arith.divf %27, %29 : vector<8x1xf32>
    %cst_12 = arith.constant 1.000000e+00 : f32
    %31 = vector.broadcast %cst_12 : f32 to vector<8x1xf32>
    %32 = arith.subf %25, %31 : vector<8x1xf32>
    %cst_13 = arith.constant 1.000000e+00 : f32
    %33 = vector.broadcast %cst_13 : f32 to vector<8x1xf32>
    %34 = arith.addf %25, %33 : vector<8x1xf32>
    %35 = arith.divf %32, %34 : vector<8x1xf32>
    %cst_14 = arith.constant 4.000000e+00 : f32
    %36 = vector.broadcast %cst_14 : f32 to vector<8x1xf32>
    %37 = arith.mulf %36, %13 : vector<8x1xf32>
    %38 = arith.mulf %15, %17 : vector<8x1xf32>
    %39 = arith.divf %37, %38 : vector<8x1xf32>
    %40 = arith.mulf %35, %30 : vector<8x1xf32>
    %41 = arith.addf %39, %40 : vector<8x1xf32>
    %cst_15 = arith.constant -1.000000e+00 : f32
    %cst_16 = arith.constant 1.000000e+00 : f32
    %42 = vector.broadcast %cst_15 : f32 to vector<8x1xf32>
    %43 = arith.maximumf %42, %35 : vector<8x1xf32>
    %44 = vector.broadcast %cst_16 : f32 to vector<8x1xf32>
    %45 = arith.minimumf %44, %43 : vector<8x1xf32>
    %46 = math.absf %45 : vector<8x1xf32>
    %cst_17 = arith.constant -0.0012624911 : f32
    %47 = vector.broadcast %cst_17 : f32 to vector<8x1xf32>
    %48 = arith.mulf %47, %46 : vector<8x1xf32>
    %cst_18 = arith.constant 6.670090e-03 : f32
    %49 = vector.broadcast %cst_18 : f32 to vector<8x1xf32>
    %50 = arith.addf %48, %49 : vector<8x1xf32>
    %51 = arith.mulf %50, %46 : vector<8x1xf32>
    %cst_19 = arith.constant -0.0170881264 : f32
    %52 = vector.broadcast %cst_19 : f32 to vector<8x1xf32>
    %53 = arith.addf %51, %52 : vector<8x1xf32>
    %54 = arith.mulf %53, %46 : vector<8x1xf32>
    %cst_20 = arith.constant 0.0308918804 : f32
    %55 = vector.broadcast %cst_20 : f32 to vector<8x1xf32>
    %56 = arith.addf %54, %55 : vector<8x1xf32>
    %57 = arith.mulf %56, %46 : vector<8x1xf32>
    %cst_21 = arith.constant -0.0501743034 : f32
    %58 = vector.broadcast %cst_21 : f32 to vector<8x1xf32>
    %59 = arith.addf %57, %58 : vector<8x1xf32>
    %60 = arith.mulf %59, %46 : vector<8x1xf32>
    %cst_22 = arith.constant 0.0889789909 : f32
    %61 = vector.broadcast %cst_22 : f32 to vector<8x1xf32>
    %62 = arith.addf %60, %61 : vector<8x1xf32>
    %63 = arith.mulf %62, %46 : vector<8x1xf32>
    %cst_23 = arith.constant -0.214598805 : f32
    %64 = vector.broadcast %cst_23 : f32 to vector<8x1xf32>
    %65 = arith.addf %63, %64 : vector<8x1xf32>
    %66 = arith.mulf %65, %46 : vector<8x1xf32>
    %cst_24 = arith.constant 1.57079625 : f32
    %67 = vector.broadcast %cst_24 : f32 to vector<8x1xf32>
    %68 = arith.addf %66, %67 : vector<8x1xf32>
    %cst_25 = arith.constant 1.000000e+00 : f32
    %69 = vector.broadcast %cst_25 : f32 to vector<8x1xf32>
    %70 = arith.subf %69, %46 : vector<8x1xf32>
    %cst_26 = arith.constant 0.000000e+00 : f32
    %71 = vector.broadcast %cst_26 : f32 to vector<8x1xf32>
    %72 = arith.maximumf %70, %71 : vector<8x1xf32>
    %73 = math.sqrt %72 : vector<8x1xf32>
    %74 = arith.mulf %73, %68 : vector<8x1xf32>
    %cst_27 = arith.constant 0.000000e+00 : f32
    %75 = vector.broadcast %cst_27 : f32 to vector<8x1xf32>
    %76 = arith.cmpf olt, %45, %75 : vector<8x1xf32>
    %cst_28 = arith.constant 3.14159274 : f32
    %77 = vector.broadcast %cst_28 : f32 to vector<8x1xf32>
    %78 = arith.subf %77, %74 : vector<8x1xf32>
    %79 = arith.select %76, %78, %74 : vector<8x1xi1>, vector<8x1xf32>
    %cst_29 = arith.constant -1.000000e+00 : f32
    %cst_30 = arith.constant 1.000000e+00 : f32
    %80 = vector.broadcast %cst_29 : f32 to vector<8x1xf32>
    %81 = arith.maximumf %80, %41 : vector<8x1xf32>
    %82 = vector.broadcast %cst_30 : f32 to vector<8x1xf32>
    %83 = arith.minimumf %82, %81 : vector<8x1xf32>
    %84 = math.absf %83 : vector<8x1xf32>
    %cst_31 = arith.constant -0.0012624911 : f32
    %85 = vector.broadcast %cst_31 : f32 to vector<8x1xf32>
    %86 = arith.mulf %85, %84 : vector<8x1xf32>
    %cst_32 = arith.constant 6.670090e-03 : f32
    %87 = vector.broadcast %cst_32 : f32 to vector<8x1xf32>
    %88 = arith.addf %86, %87 : vector<8x1xf32>
    %89 = arith.mulf %88, %84 : vector<8x1xf32>
    %cst_33 = arith.constant -0.0170881264 : f32
    %90 = vector.broadcast %cst_33 : f32 to vector<8x1xf32>
    %91 = arith.addf %89, %90 : vector<8x1xf32>
    %92 = arith.mulf %91, %84 : vector<8x1xf32>
    %cst_34 = arith.constant 0.0308918804 : f32
    %93 = vector.broadcast %cst_34 : f32 to vector<8x1xf32>
    %94 = arith.addf %92, %93 : vector<8x1xf32>
    %95 = arith.mulf %94, %84 : vector<8x1xf32>
    %cst_35 = arith.constant -0.0501743034 : f32
    %96 = vector.broadcast %cst_35 : f32 to vector<8x1xf32>
    %97 = arith.addf %95, %96 : vector<8x1xf32>
    %98 = arith.mulf %97, %84 : vector<8x1xf32>
    %cst_36 = arith.constant 0.0889789909 : f32
    %99 = vector.broadcast %cst_36 : f32 to vector<8x1xf32>
    %100 = arith.addf %98, %99 : vector<8x1xf32>
    %101 = arith.mulf %100, %84 : vector<8x1xf32>
    %cst_37 = arith.constant -0.214598805 : f32
    %102 = vector.broadcast %cst_37 : f32 to vector<8x1xf32>
    %103 = arith.addf %101, %102 : vector<8x1xf32>
    %104 = arith.mulf %103, %84 : vector<8x1xf32>
    %cst_38 = arith.constant 1.57079625 : f32
    %105 = vector.broadcast %cst_38 : f32 to vector<8x1xf32>
    %106 = arith.addf %104, %105 : vector<8x1xf32>
    %cst_39 = arith.constant 1.000000e+00 : f32
    %107 = vector.broadcast %cst_39 : f32 to vector<8x1xf32>
    %108 = arith.subf %107, %84 : vector<8x1xf32>
    %cst_40 = arith.constant 0.000000e+00 : f32
    %109 = vector.broadcast %cst_40 : f32 to vector<8x1xf32>
    %110 = arith.maximumf %108, %109 : vector<8x1xf32>
    %111 = math.sqrt %110 : vector<8x1xf32>
    %112 = arith.mulf %111, %106 : vector<8x1xf32>
    %cst_41 = arith.constant 0.000000e+00 : f32
    %113 = vector.broadcast %cst_41 : f32 to vector<8x1xf32>
    %114 = arith.cmpf olt, %83, %113 : vector<8x1xf32>
    %cst_42 = arith.constant 3.14159274 : f32
    %115 = vector.broadcast %cst_42 : f32 to vector<8x1xf32>
    %116 = arith.subf %115, %112 : vector<8x1xf32>
    %117 = arith.select %114, %116, %112 : vector<8x1xi1>, vector<8x1xf32>
    %118 = arith.subf %117, %79 : vector<8x1xf32>
    %119 = arith.mulf %79, %79 : vector<8x1xf32>
    %120 = arith.mulf %117, %117 : vector<8x1xf32>
    %121 = arith.subf %120, %119 : vector<8x1xf32>
    %122 = arith.addf %118, %121 : vector<8x1xf32>
    %123 = arith.mulf %119, %79 : vector<8x1xf32>
    %124 = arith.mulf %120, %117 : vector<8x1xf32>
    %125 = arith.subf %124, %123 : vector<8x1xf32>
    %126 = arith.addf %122, %125 : vector<8x1xf32>
    %c0_43 = arith.constant 0 : index
    %c0_44 = arith.constant 0 : index
    %127 = vector.load %arg3[%c0_43, %c0_44] : memref<1x1xf32, #tpu.memory_space<vmem>>, vector<1x1xf32>
    %cst_45 = arith.constant dense<0.000000e+00> : vector<1xf32>
    %128 = vector.multi_reduction <add>, %126, %cst_45 [0] : vector<8x1xf32> to vector<1xf32>
    %129 = vector.shape_cast %128 : vector<1xf32> to vector<1x1xf32>
    %cst_46 = arith.constant 1.250000e-01 : f32
    %130 = vector.broadcast %cst_46 : f32 to vector<1x1xf32>
    %131 = arith.mulf %130, %129 : vector<1x1xf32>
    %132 = arith.addf %127, %131 : vector<1x1xf32>
    %c0_47 = arith.constant 0 : index
    %c0_48 = arith.constant 0 : index
    %133 = vector.load %arg3[%c0_47, %c0_48] : memref<1x1xf32, #tpu.memory_space<vmem>>, vector<1x1xf32>
    tpu.vector_store %arg3[%c0_47, %c0_48], %132 {strides = array<i32>} : memref<1x1xf32, #tpu.memory_space<vmem>>, vector<1x1xf32>,
    return
  }
  func.func @transform_0(%arg0: i32) -> (i32, i32) {
    %c0_i32 = arith.constant 0 : i32
    %c0_i32_0 = arith.constant 0 : i32
    return %arg0, %c0_i32 : i32, i32
  }
  func.func @transform_1(%arg0: i32) -> (i32, i32) {
    %c0_i32 = arith.constant 0 : i32
    %c0_i32_0 = arith.constant 0 : i32
    return %arg0, %c0_i32 : i32, i32
  }
  func.func @transform_2(%arg0: i32) -> (i32, i32) {
    %c0_i32 = arith.constant 0 : i32
    %c0_i32_0 = arith.constant 0 : i32
    %c0_i32_1 = arith.constant 0 : i32
    return %c0_i32, %c0_i32_0 : i32, i32
  }
}

</mosaic_0001>

<llo_original>
// kernel: tpu_custom_call.1
$region0: #{tpu_custom_call.1}
  #allocation0 [shape = 'u32[]', space=smem, size = 0x4, offset = 0x4, fixed_abs, tag = 'smem constant byte address 0x4 - core index']
  #allocation1 [shape = 'u32[72,128]{1,0:T(1,128)}', space=vmem, size = 0x9000, scoped, tag = 'internal scratch']
  %s0 = inlined_call_operand.hbm [shape: f32[8,1024], index: 0, kind: input, shape index: {}]
  %s1 = inlined_call_operand.hbm [shape: f32[8,1024], index: 1, kind: input, shape index: {}]
  %s2 = inlined_call_operand.hbm [shape: f32[1,1], index: 2, kind: output, shape index: {}]
  %s3 = sld [smem:[#allocation0]]
  $region30: #{tpu_custom_call.1} parent=0
    _
  %s5 = ssub.s32 1, %s3
  %s6 = scalar_select 0, %s5, %s3
  $region1: #{tpu_custom_call.1} parent=0
    #allocation2 [shape = 'u8[32768]{0}', space=vmem, size = 0x8000, scoped, tag = 'input window, operand 0, single buffered']
    #allocation3 [shape = 's32[1]{0}', space=sflag, size = 0x4, scoped, tag = 'scoped memory for tpu_custom_call.1']
    #allocation4 [shape = 's32[1]{0}', space=sflag, size = 0x4, scoped, tag = 'scoped memory for tpu_custom_call.1']
    #allocation5 [shape = 'u8[32768]{0}', space=vmem, size = 0x8000, scoped, tag = 'input window, operand 1, single buffered']
    #allocation6 [shape = 's32[1]{0}', space=sflag, size = 0x4, scoped, tag = 'scoped memory for tpu_custom_call.1']
    #allocation7 [shape = 'u8[512]{0}', space=vmem, size = 0x400, scoped, tag = 'output window, operand 0, single buffered']
    %7 = vsyncpa [#allocation3], 0
    %8 = vsyncpa [#allocation6], 0
    %9 = vsyncpa [#allocation4], 0
    // Predicated region
    $region2: #{tpu_custom_call.1} parent=1 // pred_check
      _
    $region3: #{tpu_custom_call.1} parent=1 // pred_check_branch
      %11 = sbr.rel (0) target = $region5
    $region4: #{tpu_custom_call.1} parent=1 // pred_region
      %13 = vsyncadd [#allocation3], 0
      %s15 = sshll.u32 %s0, 4
      %s16 = int_to_ptr.hbm [resolvable:$true] %s15
      %s17 = sshll.u32 [#allocation2], 4
      %s18 = int_to_ptr.vmem [resolvable:$true] %s17
      %20 = dma.hbm_to_vmem [thread:$0]  %s16, 1024, %s18, [#allocation3]
    $region5: #{tpu_custom_call.1} parent=1 // pred_fallthru
      _
    // Predicated region
    $region6: #{tpu_custom_call.1} parent=1 // pred_check
      _
    $region7: #{tpu_custom_call.1} parent=1 // pred_check_branch
      %22 = sbr.rel (0) target = $region9
    $region8: #{tpu_custom_call.1} parent=1 // pred_region
      %24 = vsyncadd [#allocation6], 0
      %s26 = sshll.u32 %s1, 4
      %s27 = int_to_ptr.hbm [resolvable:$true] %s26
      %s28 = sshll.u32 [#allocation5], 4
      %s29 = int_to_ptr.vmem [resolvable:$true] %s28
      %31 = dma.hbm_to_vmem [thread:$0]  %s27, 1024, %s29, [#allocation6]
    $region9: #{tpu_custom_call.1} parent=1 // pred_fallthru
      _
    // Predicated region
    $region10: #{tpu_custom_call.1} parent=1 // pred_check
      _
    $region11: #{tpu_custom_call.1} parent=1 // pred_check_branch
      %33 = sbr.rel (0) target = $region13
    $region12: #{tpu_custom_call.1} parent=1 // pred_region
      %35 = dma.done [#allocation3], 1024
    $region13: #{tpu_custom_call.1} parent=1 // pred_fallthru
      _
    // Predicated region
    $region14: #{tpu_custom_call.1} parent=1 // pred_check
      _
    $region15: #{tpu_custom_call.1} parent=1 // pred_check_branch
      %37 = sbr.rel (0) target = $region17
    $region16: #{tpu_custom_call.1} parent=1 // pred_region
      %39 = dma.done [#allocation6], 1024
    $region17: #{tpu_custom_call.1} parent=1 // pred_fallthru
      _
    %p40 = scmp.eq.s32.totalorder 0, 0
    // Predicated region
    $region18: #{tpu_custom_call.1} parent=1 // pred_check
      %p41 = pneg %p40
    $region19: #{tpu_custom_call.1} parent=1 // pred_check_branch
      %43 = sbr.rel (%p41) target = $region21
    $region20: #{tpu_custom_call.1} parent=1 // pred_region
      %vm44 = vcmask 0
      %45 = vst.msk [vmem:[#allocation7] sm:$0x1] %vm44, 0.0
    $region21: #{tpu_custom_call.1} parent=1 // pred_fallthru
      _
    %v46 = vld [vmem:[#allocation2] sm:$0xff]
    %v47 = vld [vmem:[#allocation2 + $0x8] sm:$0xff]
    %v48 = vld [vmem:[#allocation2 + $0x10] sm:$0xff]
    %v49 = vld [vmem:[#allocation2 + $0x18] sm:$0xff]
    %v50 = vld [vmem:[#allocation2 + $0x20] sm:$0xff]
    %v51 = vld [vmem:[#allocation2 + $0x28] sm:$0xff]
    %v52 = vld [vmem:[#allocation2 + $0x30] sm:$0xff]
    %v53 = vld [vmem:[#allocation2 + $0x38] sm:$0xff]
    %v54 = vld [vmem:[#allocation5] sm:$0xff]
    %v55 = vld [vmem:[#allocation5 + $0x8] sm:$0xff]
    %v56 = vld [vmem:[#allocation5 + $0x10] sm:$0xff]
    %v57 = vld [vmem:[#allocation5 + $0x18] sm:$0xff]
    %v58 = vld [vmem:[#allocation5 + $0x20] sm:$0xff]
    %v59 = vld [vmem:[#allocation5 + $0x28] sm:$0xff]
    %v60 = vld [vmem:[#allocation5 + $0x30] sm:$0xff]
    %v61 = vld [vmem:[#allocation5 + $0x38] sm:$0xff]
    %v62 = vmul.f32 %v46, %v46
    %v63 = vmul.f32 %v47, %v47
    %v64 = vmul.f32 %v48, %v48
    %v65 = vmul.f32 %v49, %v49
    %v66 = vmul.f32 %v50, %v50
    %v67 = vmul.f32 %v51, %v51
    %v68 = vmul.f32 %v52, %v52
    %v69 = vmul.f32 %v53, %v53
    %v70 = vadd.f32 %v62, %v63
    %v71 = vadd.f32 %v70, %v64
    %v72 = vadd.f32 %v71, %v65
    %v73 = vadd.f32 %v72, %v66
    %v74 = vadd.f32 %v73, %v67
    %v75 = vadd.f32 %v74, %v68
    %v76 = vadd.f32 %v75, %v69
    %77 = vadd.xlane.f32.xlu0 %v76
    %v78 = vpop.xlane.xlu0 %77
    %v79 = vmul.f32 %v54, %v54
    %v80 = vmul.f32 %v55, %v55
    %v81 = vmul.f32 %v56, %v56
    %v82 = vmul.f32 %v57, %v57
    %v83 = vmul.f32 %v58, %v58
    %v84 = vmul.f32 %v59, %v59
    %v85 = vmul.f32 %v60, %v60
    %v86 = vmul.f32 %v61, %v61
    %v87 = vadd.f32 %v79, %v80
    %v88 = vadd.f32 %v87, %v81
    %v89 = vadd.f32 %v88, %v82
    %v90 = vadd.f32 %v89, %v83
    %v91 = vadd.f32 %v90, %v84
    %v92 = vadd.f32 %v91, %v85
    %v93 = vadd.f32 %v92, %v86
    %94 = vadd.xlane.f32.xlu0 %v93
    %v95 = vpop.xlane.xlu0 %94
    %v96 = vmul.f32 %v46, %v54
    %v97 = vmul.f32 %v47, %v55
    %v98 = vmul.f32 %v48, %v56
    %v99 = vmul.f32 %v49, %v57
    %v100 = vmul.f32 %v50, %v58
    %v101 = vmul.f32 %v51, %v59
    %v102 = vmul.f32 %v52, %v60
    %v103 = vmul.f32 %v53, %v61
    %v104 = vadd.f32 %v96, %v97
    %v105 = vadd.f32 %v104, %v98
    %v106 = vadd.f32 %v105, %v99
    %v107 = vadd.f32 %v106, %v100
    %v108 = vadd.f32 %v107, %v101
    %v109 = vadd.f32 %v108, %v102
    %v110 = vadd.f32 %v109, %v103
    %111 = vadd.xlane.f32.xlu0 %v110
    %v112 = vpop.xlane.xlu0 %111
    %v113 = vadd.f32 %v78, 1.0
    %v114 = vadd.f32 %v95, 1.0
    %v115 = vmul.f32 %v78, 4.0
    %v116 = vmul.f32 %v113, %v113
    %v117 = vrcp.pop %v116
    %v118 = vmul.f32 %v116, %v117
    %v119 = vsub.f32 1.0, %v118
    %v120 = vmul.f32 %v117, %v119
    %v121 = vadd.f32 %v117, %v120
    %vm122 = vweird.f32 %v116
    %vm123 = vweird.f32 %v117
    %vm124 = vmor %vm122, %vm123
    %v125 = vsel %vm124, %v117, %v121
    %v126 = vand.u32 2147483647, %v116
    %vm127 = vcmp.eq.f32.partialorder %v126, 8.507059e+37
    %v128 = vand.u32 %v116, 2147483648
    %v129 = vor.u32 1.1754944e-38, %v128
    %v130 = vsel %vm127, %v129, %v125
    %v131 = vmul.f32 %v115, %v130
    %v132 = vmul.f32 %v95, 4.0
    %v133 = vmul.f32 %v114, %v114
    %v134 = vrcp.pop %v133
    %v135 = vmul.f32 %v133, %v134
    %v136 = vsub.f32 1.0, %v135
    %v137 = vmul.f32 %v134, %v136
    %v138 = vadd.f32 %v134, %v137
    %vm139 = vweird.f32 %v133
    %vm140 = vweird.f32 %v134
    %vm141 = vmor %vm139, %vm140
    %v142 = vsel %vm141, %v134, %v138
    %v143 = vand.u32 2147483647, %v133
    %vm144 = vcmp.eq.f32.partialorder %v143, 8.507059e+37
    %v145 = vand.u32 %v133, 2147483648
    %v146 = vor.u32 1.1754944e-38, %v145
    %v147 = vsel %vm144, %v146, %v142
    %v148 = vmul.f32 %v132, %v147
    %v149 = vsub.f32 %v131, 1.0
    %v150 = vadd.f32 %v131, 1.0
    %v151 = vrcp.pop %v150
    %v152 = vmul.f32 %v150, %v151
    %v153 = vsub.f32 1.0, %v152
    %v154 = vmul.f32 %v151, %v153
    %v155 = vadd.f32 %v151, %v154
    %vm156 = vweird.f32 %v150
    %vm157 = vweird.f32 %v151
    %vm158 = vmor %vm156, %vm157
    %v159 = vsel %vm158, %v151, %v155
    %v160 = vand.u32 2147483647, %v150
    %vm161 = vcmp.eq.f32.partialorder %v160, 8.507059e+37
    %v162 = vand.u32 %v150, 2147483648
    %v163 = vor.u32 1.1754944e-38, %v162
    %v164 = vsel %vm161, %v163, %v159
    %v165 = vmul.f32 %v149, %v164
    %v166 = vsub.f32 %v148, 1.0
    %v167 = vadd.f32 %v148, 1.0
    %v168 = vrcp.pop %v167
    %v169 = vmul.f32 %v167, %v168
    %v170 = vsub.f32 1.0, %v169
    %v171 = vmul.f32 %v168, %v170
    %v172 = vadd.f32 %v168, %v171
    %vm173 = vweird.f32 %v167
    %vm174 = vweird.f32 %v168
    %vm175 = vmor %vm173, %vm174
    %v176 = vsel %vm175, %v168, %v172
    %v177 = vand.u32 2147483647, %v167
    %vm178 = vcmp.eq.f32.partialorder %v177, 8.507059e+37
    %v179 = vand.u32 %v167, 2147483648
    %v180 = vor.u32 1.1754944e-38, %v179
    %v181 = vsel %vm178, %v180, %v176
    %v182 = vmul.f32 %v166, %v181
    %v183 = vmul.f32 %v112, 4.0
    %v184 = vmul.f32 %v113, %v114
    %v185 = vrcp.pop %v184
    %v186 = vmul.f32 %v184, %v185
    %v187 = vsub.f32 1.0, %v186
    %v188 = vmul.f32 %v185, %v187
    %v189 = vadd.f32 %v185, %v188
    %vm190 = vweird.f32 %v184
    %vm191 = vweird.f32 %v185
    %vm192 = vmor %vm190, %vm191
    %v193 = vsel %vm192, %v185, %v189
    %v194 = vand.u32 2147483647, %v184
    %vm195 = vcmp.eq.f32.partialorder %v194, 8.507059e+37
    %v196 = vand.u32 %v184, 2147483648
    %v197 = vor.u32 1.1754944e-38, %v196
    %v198 = vsel %vm195, %v197, %v193
    %v199 = vmul.f32 %v183, %v198
    %v200 = vmul.f32 %v182, %v165
    %v201 = vadd.f32 %v199, %v200
    %v202 = vmax.f32 %v182, -1.0
    %v203 = vmin.f32 %v202, 1.0
    %v204 = vand.u32 2147483647, %v203
    %v205 = vmul.f32 %v204, -0.0012624911
    %v206 = vadd.f32 %v205, 0.00667009
    %v207 = vmul.f32 %v206, %v204
    %v208 = vadd.f32 %v207, -0.017088126
    %v209 = vmul.f32 %v208, %v204
    %v210 = vadd.f32 %v209, 0.03089188
    %v211 = vmul.f32 %v210, %v204
    %v212 = vadd.f32 %v211, -0.050174303
    %v213 = vmul.f32 %v212, %v204
    %v214 = vadd.f32 %v213, 0.08897899
    %v215 = vmul.f32 %v214, %v204
    %v216 = vadd.f32 %v215, -0.2145988
    %v217 = vmul.f32 %v216, %v204
    %v218 = vadd.f32 %v217, 1.5707963
    %v219 = vsub.f32 1.0, %v204
    %v220 = vmax.f32 %v219, 0.0
    %v221 = vrsqrt.pop %v220
    %v222 = vmul.f32 %v221, %v220
    %v223 = vmul.f32 %v222, %v221
    %v224 = vmul.f32 0.5, %v223
    %v225 = vsub.f32 1.5, %v224
    %v226 = vmul.f32 %v221, %v225
    %v227 = vmul.f32 %v220, %v226
    %vm228 = vcmp.eq.f32.partialorder %v220, inf
    %v229 = vsel %vm228, %v220, %v227
    %vm230 = vcmp.eq.f32.partialorder %v220, 0.0
    %v231 = vand.u32 %v220, 2147483648
    %v232 = vsel %vm230, %v231, %v229
    %v233 = vmul.f32 %v232, %v218
    %vm234 = vcmp.lt.f32.partialorder %v203, 0.0
    %v235 = vsub.f32 3.1415927, %v233
    %v236 = vsel %vm234, %v235, %v233
    %v237 = vmax.f32 %v201, -1.0
    %v238 = vmin.f32 %v237, 1.0
    %v239 = vand.u32 2147483647, %v238
    %v240 = vmul.f32 %v239, -0.0012624911
    %v241 = vadd.f32 %v240, 0.00667009
    %v242 = vmul.f32 %v241, %v239
    %v243 = vadd.f32 %v242, -0.017088126
    %v244 = vmul.f32 %v243, %v239
    %v245 = vadd.f32 %v244, 0.03089188
    %v246 = vmul.f32 %v245, %v239
    %v247 = vadd.f32 %v246, -0.050174303
    %v248 = vmul.f32 %v247, %v239
    %v249 = vadd.f32 %v248, 0.08897899
    %v250 = vmul.f32 %v249, %v239
    %v251 = vadd.f32 %v250, -0.2145988
    %v252 = vmul.f32 %v251, %v239
    %v253 = vadd.f32 %v252, 1.5707963
    %v254 = vsub.f32 1.0, %v239
    %v255 = vmax.f32 %v254, 0.0
    %v256 = vrsqrt.pop %v255
    %v257 = vmul.f32 %v256, %v255
    %v258 = vmul.f32 %v257, %v256
    %v259 = vmul.f32 0.5, %v258
    %v260 = vsub.f32 1.5, %v259
    %v261 = vmul.f32 %v256, %v260
    %v262 = vmul.f32 %v255, %v261
    %vm263 = vcmp.eq.f32.partialorder %v255, inf
    %v264 = vsel %vm263, %v255, %v262
    %vm265 = vcmp.eq.f32.partialorder %v255, 0.0
    %v266 = vand.u32 %v255, 2147483648
    %v267 = vsel %vm265, %v266, %v264
    %v268 = vmul.f32 %v267, %v253
    %vm269 = vcmp.lt.f32.partialorder %v238, 0.0
    %v270 = vsub.f32 3.1415927, %v268
    %v271 = vsel %vm269, %v270, %v268
    %v272 = vsub.f32 %v271, %v236
    %v273 = vmul.f32 %v236, %v236
    %v274 = vmul.f32 %v271, %v271
    %v275 = vsub.f32 %v274, %v273
    %v276 = vadd.f32 %v272, %v275
    %v277 = vmul.f32 %v273, %v236
    %v278 = vmul.f32 %v274, %v271
    %v279 = vsub.f32 %v278, %v277
    %v280 = vadd.f32 %v276, %v279
    %v281 = vld [vmem:[#allocation7] sm:$0x1]
    %v282 = vrot.slane %v280, 4
    %v283 = vadd.f32 %v280, %v282
    %v284 = vrot.slane %v283, 2
    %v285 = vadd.f32 %v283, %v284
    %v286 = vrot.slane %v285, 1
    %v287 = vadd.f32 %v285, %v286
    %v288 = vmul.f32 %v287, 0.125
    %v289 = vadd.f32 %v281, %v288
    %vm290 = vcmask 0
    %291 = vst.msk [vmem:[#allocation7] sm:$0x1] %vm290, %v289
    // Predicated region
    $region22: #{tpu_custom_call.1} parent=1 // pred_check
      _
    $region23: #{tpu_custom_call.1} parent=1 // pred_check_branch
      %293 = sbr.rel (0) target = $region25
    $region24: #{tpu_custom_call.1} parent=1 // pred_region
      %295 = vsyncadd [#allocation4], 0
      %s297 = sshll.u32 [#allocation7], 4
      %s298 = int_to_ptr.vmem [resolvable:$true] %s297
      %s299 = sshll.u32 %s2, 4
      %s300 = int_to_ptr.hbm [resolvable:$true] %s299
      %302 = dma.vmem_to_hbm [thread:$0]  %s298, 16, %s300, [#allocation4]
    $region25: #{tpu_custom_call.1} parent=1 // pred_fallthru
      _
    // Predicated region
    $region26: #{tpu_custom_call.1} parent=1 // pred_check
      _
    $region27: #{tpu_custom_call.1} parent=1 // pred_check_branch
      %304 = sbr.rel (0) target = $region29
    $region28: #{tpu_custom_call.1} parent=1 // pred_region
      %306 = dma.done [#allocation4], 16
    $region29: #{tpu_custom_call.1} parent=1 // pred_fallthru
      _
    %307 = vsyncpa [#allocation3], 1
    %308 = vsyncpa [#allocation6], 1
    %309 = vsyncpa [#allocation4], 1

</llo_original>
